<compile_context>
chip_gen: v7x
topology: tpu7x:2x2x1
jax: 0.10.0
libtpu: 0.0.40
codegen_flags: <defaults>
</compile_context>

<pallas_src>
import functools

import jax
import jax.numpy as jnp
from jax.experimental import pallas as pl
from jax.experimental.pallas import tpu as pltpu

LANES = 128
ACC_ROWS_MAX = 64   # up to 8 f32 vregs -> independent accumulation chains


def _round_up(x, m):
    return ((x + m - 1) // m) * m


def _cdiv(a, b):
    return (a + b - 1) // b


def _sublane_granule(dtype):
    # Packed dtypes need the second-to-last block dim to be a multiple of
    # 32 // itemsize (bf16 -> 16, int8/fp8 -> 32); f32 -> 8.
    return max(8, 32 // jnp.dtype(dtype).itemsize)


def _tpu_kind():
    try:
        return jax.devices()[0].device_kind.lower()
    except Exception:
        return ""


def _mse_kernel(pred_ref, gth_ref, out_ref, acc_ref, *,
                rows, tile_rows, tiles_per_slice, acc_rows):
    """Accumulate sum((pred-gth)^2) over this slice's row tiles.

    acc_ref: (acc_rows, 128) f32 VMEM vector accumulator (VPU-only adds).
    out_ref: (1, 128) lane-dense partial sums for this slice.
    """
    c = pl.program_id(0)   # slice / core index (parallel)
    i = pl.program_id(1)   # row-tile index within the slice (reduction)

    @pl.when(i == 0)
    def _():
        acc_ref[...] = jnp.zeros_like(acc_ref)

    d = pred_ref[...].astype(jnp.float32) - gth_ref[...].astype(jnp.float32)
    sq = d * d

    t = c * tiles_per_slice + i
    rows_left = rows - t * tile_rows

    @pl.when(rows_left >= tile_rows)
    def _():
        # Interior tile: every row valid, skip the mask (halves VALU work).
        acc_ref[...] += sq.reshape(-1, acc_rows, LANES).sum(axis=0)

    @pl.when(rows_left < tile_rows)
    def _():
        # Boundary tile or fully-dead (clamped re-read) tile: mask stale rows.
        # Keep the select form — multiply-by-mask would propagate NaNs from
        # uninitialized VMEM rows.
        row_ids = jax.lax.broadcasted_iota(jnp.int32, sq.shape, 0)
        sq_m = jnp.where(row_ids < rows_left, sq, jnp.float32(0.0))
        acc_ref[...] += sq_m.reshape(-1, acc_rows, LANES).sum(axis=0)

    @pl.when(i == pl.num_programs(1) - 1)
    def _():
        # Single sublane reduce per slice; cross-lane sum + 1/n in the wrapper.
        out_ref[...] = jnp.sum(acc_ref[...], axis=0, keepdims=True)


def _mse_partial_sums(pred2d, gth2d, rows, num_slices, tile_cap):
    """Run the Pallas reduction over a lane-dense (rows, 128) slab."""
    granule = max(_sublane_granule(pred2d.dtype), _sublane_granule(gth2d.dtype))

    # Balance rows across slices*steps tiles so both v7x TCs finish together
    # (avoids a whole masked dead tile of DMA on one core); clamp to the cap.
    steps = max(1, _cdiv(rows, num_slices * tile_cap))
    tile_rows = min(tile_cap,
                    _round_up(_cdiv(rows, num_slices * steps), granule))
    num_tiles = _cdiv(rows, tile_rows)
    tiles_per_slice = _cdiv(num_tiles, num_slices)

    # Widest accumulator that divides the tile (breaks the dependent add chain
    # into independent sub-chains); always >= 8 since tile_rows % 8 == 0.
    acc_rows = ACC_ROWS_MAX
    while tile_rows % acc_rows != 0:
        acc_rows //= 2

    def in_map(c, i):
        # Clamp so a slice's trailing (fully masked) steps never index past the
        # last real block; the in-kernel row mask zeroes their contribution.
        return (jnp.minimum(c * tiles_per_slice + i, num_tiles - 1), 0)

    kernel = functools.partial(
        _mse_kernel, rows=rows, tile_rows=tile_rows,
        tiles_per_slice=tiles_per_slice, acc_rows=acc_rows)

    n_main = rows * LANES
    in_bytes = n_main * (jnp.dtype(pred2d.dtype).itemsize
                         + jnp.dtype(gth2d.dtype).itemsize)
    cost = pl.CostEstimate(flops=3 * n_main, transcendentals=0,
                           bytes_accessed=in_bytes + num_slices * LANES * 4)

    return pl.pallas_call(
        kernel,
        out_shape=jax.ShapeDtypeStruct((num_slices, LANES), jnp.float32),
        grid_spec=pltpu.PrefetchScalarGridSpec(
            num_scalar_prefetch=0,
            grid=(num_slices, tiles_per_slice),
            in_specs=[
                pl.BlockSpec((tile_rows, LANES), in_map),
                pl.BlockSpec((tile_rows, LANES), in_map),
            ],
            out_specs=pl.BlockSpec((1, LANES), lambda c, i: (c, 0)),
            scratch_shapes=[pltpu.VMEM((acc_rows, LANES), jnp.float32)],
        ),
        compiler_params=pltpu.CompilerParams(
            # axis 0: independent slices (both TCs on v7x; size 1 elsewhere)
            # axis 1: reduction carried in the VMEM accumulator
            dimension_semantics=("parallel", "arbitrary"),
        ),
        cost_estimate=cost,
    )(pred2d, gth2d)


def item_mse_loss(item_pred, item_gth):
    """Pallas equivalent of F.mse_loss(item_pred, item_gth) (mean reduction)."""
    assert item_pred.shape == item_gth.shape
    n = item_pred.size

    pred_flat = item_pred.reshape(-1)
    gth_flat = item_gth.reshape(-1)

    kind = _tpu_kind()
    # Single-TC chips (v5e/v6e/others): one slice — no clamped dead tile, no
    # wasted re-read. Two slices only on v7x (two TensorCores per chip).
    # TODO(synk): on v7x, confirm via xprof that "parallel" shards axis 0
    # across both TCs; if not, switch to pltpu.CORE_PARALLEL for that axis.
    num_slices = 2 if "v7" in kind else 1
    # Tile cap sized to the scoped-VMEM default per generation:
    #   v6e/v7x: 8192 rows f32 = 4 MiB/block, 16 MiB with 2 inputs x 2 buffers
    #   v5e/unknown: 4096 rows = 2 MiB/block, 8 MiB total (16 MiB default).
    tile_cap = 8192 if ("v6" in kind or "v7" in kind) else 4096

    n_main = (n // LANES) * LANES
    total = jnp.float32(0.0)

    if n_main > 0:
        rows = n_main // LANES
        out = _mse_partial_sums(pred_flat[:n_main].reshape(rows, LANES),
                                gth_flat[:n_main].reshape(rows, LANES),
                                rows, num_slices, tile_cap)
        total = total + jnp.sum(out)

    if n_main < n:
        # <128-element ragged tail: plain JAX, added before the 1/n scale.
        dt = (pred_flat[n_main:].astype(jnp.float32)
              - gth_flat[n_main:].astype(jnp.float32))
        total = total + jnp.sum(dt * dt)

    return total / jnp.float32(n)


if __name__ == "__main__":
    key = jax.random.PRNGKey(0)
    k1, k2 = jax.random.split(key)
    shape = (2, 4, 16, 16)  # NCHW-shaped example inputs
    item_pred = jax.random.normal(k1, shape, dtype=jnp.float32)
    item_gth = jax.random.normal(k2, shape, dtype=jnp.float32)

    loss = item_mse_loss(item_pred, item_gth)
    loss = jax.block_until_ready(loss)

    # correctness check against plain-JAX reference
    ref = jnp.mean((item_pred - item_gth) ** 2)
    assert jnp.allclose(loss, ref, rtol=1e-5, atol=1e-6), (loss, ref)

    print("KERNEL_OK")
</pallas_src>

<mosaic_0001>
module attributes {stable_mosaic.version = 11 : i64} {
  func.func @_mse_kernel(%arg0: i32, %arg1: i32, %arg2: memref<16x128xf32, #tpu.memory_space<vmem>>, %arg3: memref<16x128xf32, #tpu.memory_space<vmem>>, %arg4: memref<1x128xf32, #tpu.memory_space<vmem>>, %arg5: memref<16x128xf32, #tpu.memory_space<vmem>>) attributes {dimension_semantics = [#tpu.dimension_semantics<parallel>, #tpu.dimension_semantics<arbitrary>], iteration_bounds = array<i64: 1, 1>, scalar_prefetch = 0 : i64, scratch_operands = 1 : i64, tpu.core_type = #tpu.core_type<tc>, window_params = [{transform_indices = @transform_0, window_bounds = array<i64: 16, 128>}, {transform_indices = @transform_1, window_bounds = array<i64: 16, 128>}, {transform_indices = @transform_2, window_bounds = array<i64: 1, 128>}]} {
    %c0_i32 = arith.constant 0 : i32
    %0 = arith.cmpi eq, %arg1, %c0_i32 : i32
    %1 = arith.extui %0 : i1 to i32
    %c0_i32_0 = arith.constant 0 : i32
    %2 = arith.cmpi ne, %1, %c0_i32_0 : i32
    scf.if %2 {
      %cst = arith.constant 0.000000e+00 : f32
      %20 = vector.broadcast %cst : f32 to vector<16x128xf32>
      %c0_11 = arith.constant 0 : index
      %c0_12 = arith.constant 0 : index
      %21 = vector.load %arg5[%c0_11, %c0_12] : memref<16x128xf32, #tpu.memory_space<vmem>>, vector<16x128xf32>
      tpu.vector_store %arg5[%c0_11, %c0_12], %20 {strides = array<i32>} : memref<16x128xf32, #tpu.memory_space<vmem>>, vector<16x128xf32>,
    } else {
    }
    %c0 = arith.constant 0 : index
    %c0_1 = arith.constant 0 : index
    %3 = vector.load %arg2[%c0, %c0_1] : memref<16x128xf32, #tpu.memory_space<vmem>>, vector<16x128xf32>
    %c0_2 = arith.constant 0 : index
    %c0_3 = arith.constant 0 : index
    %4 = vector.load %arg3[%c0_2, %c0_3] : memref<16x128xf32, #tpu.memory_space<vmem>>, vector<16x128xf32>
    %5 = arith.subf %3, %4 : vector<16x128xf32>
    %6 = arith.mulf %5, %5 : vector<16x128xf32>
    %c1_i32 = arith.constant 1 : i32
    %7 = arith.muli %arg0, %c1_i32 : i32
    %8 = arith.addi %7, %arg1 : i32
    %c16_i32 = arith.constant 16 : i32
    %9 = arith.muli %8, %c16_i32 : i32
    %c16_i32_4 = arith.constant 16 : i32
    %10 = arith.subi %c16_i32_4, %9 : i32
    %c16_i32_5 = arith.constant 16 : i32
    %11 = arith.cmpi sge, %10, %c16_i32_5 : i32
    %12 = arith.extui %11 : i1 to i32
    %c0_i32_6 = arith.constant 0 : i32
    %13 = arith.cmpi ne, %12, %c0_i32_6 : i32
    scf.if %13 {
      %c0_11 = arith.constant 0 : index
      %c0_12 = arith.constant 0 : index
      %20 = vector.load %arg5[%c0_11, %c0_12] : memref<16x128xf32, #tpu.memory_space<vmem>>, vector<16x128xf32>
      %21 = vector.shape_cast %6 : vector<16x128xf32> to vector<1x16x128xf32>
      %cst = arith.constant dense<0.000000e+00> : vector<16x128xf32>
      %22 = vector.multi_reduction <add>, %21, %cst [0] : vector<1x16x128xf32> to vector<16x128xf32>
      %23 = arith.addf %20, %22 : vector<16x128xf32>
      %c0_13 = arith.constant 0 : index
      %c0_14 = arith.constant 0 : index
      %24 = vector.load %arg5[%c0_13, %c0_14] : memref<16x128xf32, #tpu.memory_space<vmem>>, vector<16x128xf32>
      tpu.vector_store %arg5[%c0_13, %c0_14], %23 {strides = array<i32>} : memref<16x128xf32, #tpu.memory_space<vmem>>, vector<16x128xf32>,
    } else {
    }
    %c16_i32_7 = arith.constant 16 : i32
    %14 = arith.cmpi slt, %10, %c16_i32_7 : i32
    %15 = arith.extui %14 : i1 to i32
    %c0_i32_8 = arith.constant 0 : i32
    %16 = arith.cmpi ne, %15, %c0_i32_8 : i32
    scf.if %16 {
      %20 = tpu.iota {dimensions = array<i32: 0>} : vector<16x128xi32>
      %21 = vector.broadcast %10 : i32 to vector<16x128xi32>
      %22 = arith.cmpi slt, %20, %21 : vector<16x128xi32>
      %cst = arith.constant 0.000000e+00 : f32
      %23 = vector.broadcast %cst : f32 to vector<16x128xf32>
      %24 = arith.select %22, %6, %23 : vector<16x128xi1>, vector<16x128xf32>
      %c0_11 = arith.constant 0 : index
      %c0_12 = arith.constant 0 : index
      %25 = vector.load %arg5[%c0_11, %c0_12] : memref<16x128xf32, #tpu.memory_space<vmem>>, vector<16x128xf32>
      %26 = vector.shape_cast %24 : vector<16x128xf32> to vector<1x16x128xf32>
      %cst_13 = arith.constant dense<0.000000e+00> : vector<16x128xf32>
      %27 = vector.multi_reduction <add>, %26, %cst_13 [0] : vector<1x16x128xf32> to vector<16x128xf32>
      %28 = arith.addf %25, %27 : vector<16x128xf32>
      %c0_14 = arith.constant 0 : index
      %c0_15 = arith.constant 0 : index
      %29 = vector.load %arg5[%c0_14, %c0_15] : memref<16x128xf32, #tpu.memory_space<vmem>>, vector<16x128xf32>
      tpu.vector_store %arg5[%c0_14, %c0_15], %28 {strides = array<i32>} : memref<16x128xf32, #tpu.memory_space<vmem>>, vector<16x128xf32>,
    } else {
    }
    %c0_i32_9 = arith.constant 0 : i32
    %17 = arith.cmpi eq, %arg1, %c0_i32_9 : i32
    %18 = arith.extui %17 : i1 to i32
    %c0_i32_10 = arith.constant 0 : i32
    %19 = arith.cmpi ne, %18, %c0_i32_10 : i32
    scf.if %19 {
      %c0_11 = arith.constant 0 : index
      %c0_12 = arith.constant 0 : index
      %20 = vector.load %arg5[%c0_11, %c0_12] : memref<16x128xf32, #tpu.memory_space<vmem>>, vector<16x128xf32>
      %cst = arith.constant dense<0.000000e+00> : vector<128xf32>
      %21 = vector.multi_reduction <add>, %20, %cst [0] : vector<16x128xf32> to vector<128xf32>
      %22 = vector.shape_cast %21 : vector<128xf32> to vector<1x128xf32>
      %c0_13 = arith.constant 0 : index
      %c0_14 = arith.constant 0 : index
      %23 = vector.load %arg4[%c0_13, %c0_14] : memref<1x128xf32, #tpu.memory_space<vmem>>, vector<1x128xf32>
      tpu.vector_store %arg4[%c0_13, %c0_14], %22 {strides = array<i32>} : memref<1x128xf32, #tpu.memory_space<vmem>>, vector<1x128xf32>,
    } else {
    }
    return
  }
  func.func @transform_0(%arg0: i32, %arg1: i32) -> (i32, i32) {
    %c1_i32 = arith.constant 1 : i32
    %0 = arith.muli %arg0, %c1_i32 : i32
    %1 = arith.addi %0, %arg1 : i32
    %c0_i32 = arith.constant 0 : i32
    %2 = arith.minsi %1, %c0_i32 : i32
    %c0_i32_0 = arith.constant 0 : i32
    %c0_i32_1 = arith.constant 0 : i32
    return %2, %c0_i32_0 : i32, i32
  }
  func.func @transform_1(%arg0: i32, %arg1: i32) -> (i32, i32) {
    %c1_i32 = arith.constant 1 : i32
    %0 = arith.muli %arg0, %c1_i32 : i32
    %1 = arith.addi %0, %arg1 : i32
    %c0_i32 = arith.constant 0 : i32
    %2 = arith.minsi %1, %c0_i32 : i32
    %c0_i32_0 = arith.constant 0 : i32
    %c0_i32_1 = arith.constant 0 : i32
    return %2, %c0_i32_0 : i32, i32
  }
  func.func @transform_2(%arg0: i32, %arg1: i32) -> (i32, i32) {
    %c0_i32 = arith.constant 0 : i32
    %c0_i32_0 = arith.constant 0 : i32
    return %arg0, %c0_i32 : i32, i32
  }
}

</mosaic_0001>

<llo_original>
// kernel: tpu_custom_call.1
$region0: #{tpu_custom_call.1}
  #allocation0 [shape = 'u32[]', space=smem, size = 0x4, offset = 0x4, fixed_abs, tag = 'smem constant byte address 0x4 - core index']
  #allocation1 [shape = 'u32[144,128]{1,0:T(1,128)}', space=vmem, size = 0x12000, scoped, tag = 'internal scratch']
  #allocation2 [shape = 'f32[16,128]{1,0:T(8,128)}', space=vmem, size = 0x2000, scoped, tag = 'scratch operand']
  %s0 = inlined_call_operand.hbm [shape: f32[16,128], index: 0, kind: input, shape index: {}]
  %s1 = inlined_call_operand.hbm [shape: f32[16,128], index: 1, kind: input, shape index: {}]
  %s2 = inlined_call_operand.hbm [shape: f32[1,128], index: 2, kind: output, shape index: {}]
  %s3 = sld [smem:[#allocation0]]
  $region42: #{tpu_custom_call.1} parent=0
    _
  %s5 = ssub.s32 1, %s3
  %s6 = scalar_select 0, %s5, %s3
  $region1: #{tpu_custom_call.1} parent=0
    #allocation3 [shape = 'u8[8192]{0}', space=vmem, size = 0x2000, scoped, tag = 'input window, operand 0, single buffered']
    #allocation4 [shape = 's32[1]{0}', space=sflag, size = 0x4, scoped, tag = 'scoped memory for tpu_custom_call.1']
    #allocation5 [shape = 's32[1]{0}', space=sflag, size = 0x4, scoped, tag = 'scoped memory for tpu_custom_call.1']
    #allocation6 [shape = 'u8[8192]{0}', space=vmem, size = 0x2000, scoped, tag = 'input window, operand 1, single buffered']
    #allocation7 [shape = 's32[1]{0}', space=sflag, size = 0x4, scoped, tag = 'scoped memory for tpu_custom_call.1']
    #allocation8 [shape = 'u8[512]{0}', space=vmem, size = 0x400, scoped, tag = 'output window, operand 0, single buffered']
    %7 = vsyncpa [#allocation4], 0
    %8 = vsyncpa [#allocation7], 0
    %9 = vsyncpa [#allocation5], 0
    // Predicated region
    $region2: #{tpu_custom_call.1} parent=1 // pred_check
      _
    $region3: #{tpu_custom_call.1} parent=1 // pred_check_branch
      %11 = sbr.rel (0) target = $region5
    $region4: #{tpu_custom_call.1} parent=1 // pred_region
      %s12 = sadd.s32 0, 0
      %p13 = scmp.lt.s32.totalorder %s12, 0
      %s14 = scalar_select %p13, %s12, 0
      %s15 = smul.u32 2, %s14
      %s17 = ssub.s32 256, 256
      %18 = vsyncadd [#allocation4], %s17
      %s19 = smul.addr %s15, 128
      %s20 = scalar_lea.hbm %s0, %s19
      %s21 = sshll.u32 [#allocation3], 4
      %s22 = int_to_ptr.vmem [resolvable:$true] %s21
      %27 = dma.hbm_to_vmem [thread:$0]  %s20, 256, %s22, [#allocation4], 128, 128, 8
    $region5: #{tpu_custom_call.1} parent=1 // pred_fallthru
      _
    // Predicated region
    $region6: #{tpu_custom_call.1} parent=1 // pred_check
      _
    $region7: #{tpu_custom_call.1} parent=1 // pred_check_branch
      %29 = sbr.rel (0) target = $region9
    $region8: #{tpu_custom_call.1} parent=1 // pred_region
      %s30 = sadd.s32 0, 0
      %p31 = scmp.lt.s32.totalorder %s30, 0
      %s32 = scalar_select %p31, %s30, 0
      %s33 = smul.u32 2, %s32
      %s35 = ssub.s32 256, 256
      %36 = vsyncadd [#allocation7], %s35
      %s37 = smul.addr %s33, 128
      %s38 = scalar_lea.hbm %s1, %s37
      %s39 = sshll.u32 [#allocation6], 4
      %s40 = int_to_ptr.vmem [resolvable:$true] %s39
      %45 = dma.hbm_to_vmem [thread:$0]  %s38, 256, %s40, [#allocation7], 128, 128, 8
    $region9: #{tpu_custom_call.1} parent=1 // pred_fallthru
      _
    // Predicated region
    $region10: #{tpu_custom_call.1} parent=1 // pred_check
      _
    $region11: #{tpu_custom_call.1} parent=1 // pred_check_branch
      %47 = sbr.rel (0) target = $region13
    $region12: #{tpu_custom_call.1} parent=1 // pred_region
      %48 = dma.done [#allocation4], 256
    $region13: #{tpu_custom_call.1} parent=1 // pred_fallthru
      _
    // Predicated region
    $region14: #{tpu_custom_call.1} parent=1 // pred_check
      _
    $region15: #{tpu_custom_call.1} parent=1 // pred_check_branch
      %50 = sbr.rel (0) target = $region17
    $region16: #{tpu_custom_call.1} parent=1 // pred_region
      %51 = dma.done [#allocation7], 256
    $region17: #{tpu_custom_call.1} parent=1 // pred_fallthru
      _
    %s52 = sadd.s32 0, 0
    %p53 = scmp.lt.s32.totalorder %s52, 0
    %s54 = scalar_select %p53, %s52, 0
    %s55 = smul.u32 2, %s54
    %s56 = sadd.s32 0, 0
    %p57 = scmp.lt.s32.totalorder %s56, 0
    %s58 = scalar_select %p57, %s56, 0
    %s59 = smul.u32 2, %s58
    %p60 = scmp.eq.s32.totalorder 0, 0
    // Predicated region
    $region18: #{tpu_custom_call.1} parent=1 // pred_check
      %p61 = pneg %p60
    $region19: #{tpu_custom_call.1} parent=1 // pred_check_branch
      %63 = sbr.rel (%p61) target = $region21
    $region20: #{tpu_custom_call.1} parent=1 // pred_region
      %64 = vst [vmem:[#allocation2] sm:$0xff] 0.0
      %65 = vst [vmem:[#allocation2 + $0x8] sm:$0xff] 0.0
    $region21: #{tpu_custom_call.1} parent=1 // pred_fallthru
      _
    %v66 = vld [vmem:[#allocation3] sm:$0xff]
    %v67 = vld [vmem:[#allocation3 + $0x8] sm:$0xff]
    %v68 = vld [vmem:[#allocation6] sm:$0xff]
    %v69 = vld [vmem:[#allocation6 + $0x8] sm:$0xff]
    %v70 = vsub.f32 %v66, %v68
    %v71 = vsub.f32 %v67, %v69
    %v72 = vmul.f32 %v70, %v70
    %v73 = vmul.f32 %v71, %v71
    %s74 = sadd.s32 0, 0
    %s75 = smul.u32 %s74, 16
    %s76 = ssub.s32 16, %s75
    %p77 = scmp.ge.s32.totalorder %s76, 16
    // Predicated region
    $region22: #{tpu_custom_call.1} parent=1 // pred_check
      %p78 = pneg %p77
    $region23: #{tpu_custom_call.1} parent=1 // pred_check_branch
      %80 = sbr.rel (%p78) target = $region25
    $region24: #{tpu_custom_call.1} parent=1 // pred_region
      %v81 = vld [vmem:[#allocation2] sm:$0xff]
      %v82 = vld [vmem:[#allocation2 + $0x8] sm:$0xff]
      %v83 = vadd.f32 %v72, 0.0
      %v84 = vadd.f32 %v73, 0.0
      %v85 = vadd.f32 %v81, %v83
      %v86 = vadd.f32 %v82, %v84
      %87 = vst [vmem:[#allocation2] sm:$0xff] %v85
      %88 = vst [vmem:[#allocation2 + $0x8] sm:$0xff] %v86
    $region25: #{tpu_custom_call.1} parent=1 // pred_fallthru
      _
    %p89 = scmp.lt.s32.totalorder %s76, 16
    // Predicated region
    $region26: #{tpu_custom_call.1} parent=1 // pred_check
      %p90 = pneg %p89
    $region27: #{tpu_custom_call.1} parent=1 // pred_check_branch
      %92 = sbr.rel (%p90) target = $region29
    $region28: #{tpu_custom_call.1} parent=1 // pred_region
      %v93 = vlaneseq
      %v94 = vshrl.u32 %v93, 7
      %v95 = vadd.s32 %v94, 8
      %v96 = vstv %s76
      %vm97 = vcmp.lt.s32.totalorder %v94, %v96
      %vm98 = vcmp.lt.s32.totalorder %v95, %v96
      %v99 = vsel %vm97, %v72, 0.0
      %v100 = vsel %vm98, %v73, 0.0
      %v101 = vld [vmem:[#allocation2] sm:$0xff]
      %v102 = vld [vmem:[#allocation2 + $0x8] sm:$0xff]
      %v103 = vadd.f32 %v99, 0.0
      %v104 = vadd.f32 %v100, 0.0
      %v105 = vadd.f32 %v101, %v103
      %v106 = vadd.f32 %v102, %v104
      %107 = vst [vmem:[#allocation2] sm:$0xff] %v105
      %108 = vst [vmem:[#allocation2 + $0x8] sm:$0xff] %v106
    $region29: #{tpu_custom_call.1} parent=1 // pred_fallthru
      _
    // Predicated region
    $region30: #{tpu_custom_call.1} parent=1 // pred_check
      %p109 = pneg %p60
    $region31: #{tpu_custom_call.1} parent=1 // pred_check_branch
      %111 = sbr.rel (%p109) target = $region33
    $region32: #{tpu_custom_call.1} parent=1 // pred_region
      %v112 = vld [vmem:[#allocation2] sm:$0xff]
      %v113 = vld [vmem:[#allocation2 + $0x8] sm:$0xff]
      %v114 = vadd.f32 %v112, %v113
      %v115 = vrot.slane %v114, 4
      %v116 = vadd.f32 %v114, %v115
      %v117 = vrot.slane %v116, 2
      %v118 = vadd.f32 %v116, %v117
      %v119 = vrot.slane %v118, 1
      %v120 = vadd.f32 %v118, %v119
      %121 = vst [vmem:[#allocation8] sm:$0x1] %v120
    $region33: #{tpu_custom_call.1} parent=1 // pred_fallthru
      _
    // Predicated region
    $region34: #{tpu_custom_call.1} parent=1 // pred_check
      _
    $region35: #{tpu_custom_call.1} parent=1 // pred_check_branch
      %123 = sbr.rel (0) target = $region37
    $region36: #{tpu_custom_call.1} parent=1 // pred_region
      %s125 = ssub.s32 16, 16
      %126 = vsyncadd [#allocation5], %s125
      %s128 = sshll.u32 [#allocation8], 4
      %s129 = int_to_ptr.vmem [resolvable:$true] %s128
      %131 = dma.vmem_to_hbm [thread:$0]  %s129, 16, %s2, [#allocation5]
    $region37: #{tpu_custom_call.1} parent=1 // pred_fallthru
      _
    // Predicated region
    $region38: #{tpu_custom_call.1} parent=1 // pred_check
      _
    $region39: #{tpu_custom_call.1} parent=1 // pred_check_branch
      %133 = sbr.rel (0) target = $region41
    $region40: #{tpu_custom_call.1} parent=1 // pred_region
      %134 = dma.done [#allocation5], 16
    $region41: #{tpu_custom_call.1} parent=1 // pred_fallthru
      _
    %135 = vsyncpa [#allocation4], 1
    %136 = vsyncpa [#allocation7], 1
    %137 = vsyncpa [#allocation5], 1

</llo_original>
